<compile_context>
chip_gen: v7x
topology: tpu7x:2x2x1
jax: 0.10.0
libtpu: 0.0.40
codegen_flags: <defaults>
</compile_context>

<pallas_src>
import functools

import jax
import jax.numpy as jnp
from jax.experimental import pallas as pl
from jax.experimental.pallas import tpu as pltpu

LEAKY_SLOPE = 0.01  # nn.LeakyReLU() default negative_slope


def _round_up(x, m):
    return (x + m - 1) // m * m


def _autoencoder_kernel(x_ref, w1_ref, b1_ref, w2_ref, b2_ref, *rest,
                        dropout_p, apply_dropout):
    if apply_dropout:
        u_ref, emb_ref, out_ref = rest
    else:
        emb_ref, out_ref = rest

    # ---- encoder: Linear(in_dim -> h_dim) + LeakyReLU (bf16 MXU, f32 acc) ----
    x_bf16 = x_ref[...].astype(jnp.bfloat16)                  # [Bt, in_dim]
    h = jnp.dot(x_bf16, w1_ref[...],
                preferred_element_type=jnp.float32) + b1_ref[...]
    emb = jnp.where(h >= 0.0, h, LEAKY_SLOPE * h)             # LeakyReLU, f32 VPU

    # ---- inverted dropout (matches F.dropout semantics) ----
    if apply_dropout:
        keep = (u_ref[...] >= dropout_p).astype(jnp.float32)  # P(keep) = 1 - p
        emb = emb * (keep * (1.0 / (1.0 - dropout_p)))
    # else: eval mode -> dropout is identity

    emb_ref[...] = emb

    # ---- decoder: Linear(h_dim -> in_dim) ----
    out_ref[...] = jnp.dot(emb.astype(jnp.bfloat16), w2_ref[...],
                           preferred_element_type=jnp.float32) + b2_ref[...]


def autoencoder_forward(x, w1, b1, w2, b2, *, dropout_p=0.5, training=False,
                        rng_key=None, block_b=256):
    """Returns (embedding, out) exactly like the PyTorch module's forward."""
    B, in_dim = x.shape
    h_dim = w1.shape[1]
    apply_dropout = bool(training) and float(dropout_p) > 0.0

    # Batch tile: multiple of 8 sublanes; default 256 rows to fill the MXU on
    # v6e/v7x (128-row tiles already saturate v5e's 4x128^2 MXU).
    bb = _round_up(min(int(block_b), _round_up(B, 8)), 8)
    B_pad = _round_up(B, bb)
    if B_pad != B:
        x = jnp.pad(x, ((0, B_pad - B), (0, 0)))
    x = x.astype(jnp.float32)

    # bf16 weights: native MXU input dtype, halves weight VMEM/DMA traffic.
    w1 = w1.astype(jnp.bfloat16)
    w2 = w2.astype(jnp.bfloat16)
    b1 = b1.astype(jnp.float32)
    b2 = b2.astype(jnp.float32)

    in_specs = [
        pl.BlockSpec((bb, in_dim), lambda i: (i, 0)),       # x    (tiled on batch)
        pl.BlockSpec((in_dim, h_dim), lambda i: (0, 0)),    # w1   (VMEM-resident)
        pl.BlockSpec((1, h_dim), lambda i: (0, 0)),         # b1
        pl.BlockSpec((h_dim, in_dim), lambda i: (0, 0)),    # w2
        pl.BlockSpec((1, in_dim), lambda i: (0, 0)),        # b2
    ]
    args = [x, w1, b1, w2, b2]

    if apply_dropout:
        if rng_key is None:
            rng_key = jax.random.PRNGKey(0)
        u = jax.random.uniform(rng_key, (B_pad, h_dim), jnp.float32)
        in_specs.append(pl.BlockSpec((bb, h_dim), lambda i: (i, 0)))
        args.append(u)

    kernel = functools.partial(_autoencoder_kernel,
                               dropout_p=float(dropout_p),
                               apply_dropout=apply_dropout)

    grid_spec = pltpu.PrefetchScalarGridSpec(
        num_scalar_prefetch=0,
        grid=(B_pad // bb,),
        in_specs=in_specs,
        out_specs=[
            pl.BlockSpec((bb, h_dim), lambda i: (i, 0)),    # embedding
            pl.BlockSpec((bb, in_dim), lambda i: (i, 0)),   # out
        ],
    )

    emb, out = pl.pallas_call(
        kernel,
        out_shape=(jax.ShapeDtypeStruct((B_pad, h_dim), jnp.float32),
                   jax.ShapeDtypeStruct((B_pad, in_dim), jnp.float32)),
        grid_spec=grid_spec,
        compiler_params=pltpu.CompilerParams(
            dimension_semantics=("parallel",)),   # v7x: split batch tiles over 2 TCs
    )(*args)

    return emb[:B], out[:B]


def init_params(key, in_dim=256, h_dim=128):
    """Deterministic synthetic parameters (shapes match the nn.Linear layers)."""
    k1, k2, k3, k4 = jax.random.split(key, 4)
    # encoder Linear(in_dim, h_dim): weight [h_dim, in_dim] -> stored transposed
    w1 = jax.random.normal(k1, (in_dim, h_dim), jnp.float32) * 0.05
    b1 = jax.random.normal(k2, (1, h_dim), jnp.float32) * 0.01
    # decoder Linear(h_dim, in_dim): weight [in_dim, h_dim] -> stored transposed
    w2 = jax.random.normal(k3, (h_dim, in_dim), jnp.float32) * 0.05
    b2 = jax.random.normal(k4, (1, in_dim), jnp.float32) * 0.01
    return w1, b1, w2, b2


if __name__ == "__main__":
    IN_DIM, H_DIM, BATCH = 256, 128, 256  # module defaults; batch tiled in 128-row blocks

    key = jax.random.PRNGKey(0)
    kx, kp, kd = jax.random.split(key, 3)
    x = jax.random.normal(kx, (BATCH, IN_DIM), jnp.float32)
    w1, b1, w2, b2 = init_params(kp, IN_DIM, H_DIM)

    # Eval-mode forward (dropout is identity); block_b=128 -> grid=(2,) exercises
    # the pipelined / parallel batch tiling.
    emb, out = autoencoder_forward(x, w1, b1, w2, b2,
                                   dropout_p=0.5, training=False, block_b=128)
    jax.block_until_ready((emb, out))

    # Sanity check against a pure-JAX reference using the same bf16-weight /
    # f32-accumulate math as the kernel.
    xb = x.astype(jnp.bfloat16)
    w1b = w1.astype(jnp.bfloat16)
    w2b = w2.astype(jnp.bfloat16)
    h_ref = jnp.dot(xb, w1b, preferred_element_type=jnp.float32) + b1
    emb_ref = jnp.where(h_ref >= 0.0, h_ref, LEAKY_SLOPE * h_ref)
    out_ref = jnp.dot(emb_ref.astype(jnp.bfloat16), w2b,
                      preferred_element_type=jnp.float32) + b2
    assert jnp.allclose(emb, emb_ref, atol=1e-4, rtol=1e-4), "embedding mismatch"
    assert jnp.allclose(out, out_ref, atol=1e-4, rtol=1e-4), "output mismatch"

    # Also exercise the training (dropout) path once; ~half the embedding
    # entries should be zeroed by inverted dropout.
    emb_t, out_t = autoencoder_forward(x, w1, b1, w2, b2,
                                       dropout_p=0.5, training=True,
                                       rng_key=kd, block_b=128)
    jax.block_until_ready((emb_t, out_t))
    zero_frac = float(jnp.mean((emb_t == 0.0).astype(jnp.float32)))
    assert 0.3 < zero_frac < 0.7, f"unexpected dropout zero fraction {zero_frac}"

    print("KERNEL_OK")
</pallas_src>

<mosaic_0001>
module attributes {stable_mosaic.version = 11 : i64} {
  func.func @_autoencoder_kernel(%arg0: i32, %arg1: memref<128x256xf32, #tpu.memory_space<vmem>>, %arg2: memref<256x128xbf16, #tpu.memory_space<vmem>>, %arg3: memref<1x128xf32, #tpu.memory_space<vmem>>, %arg4: memref<128x256xbf16, #tpu.memory_space<vmem>>, %arg5: memref<1x256xf32, #tpu.memory_space<vmem>>, %arg6: memref<128x128xf32, #tpu.memory_space<vmem>>, %arg7: memref<128x256xf32, #tpu.memory_space<vmem>>) attributes {dimension_semantics = [#tpu.dimension_semantics<parallel>], iteration_bounds = array<i64: 2>, scalar_prefetch = 0 : i64, scratch_operands = 0 : i64, tpu.core_type = #tpu.core_type<tc>, window_params = [{transform_indices = @transform_0, window_bounds = array<i64: 128, 256>}, {pipeline_mode = #tpu.pipeline_mode<synchronous>, transform_indices = @transform_1, window_bounds = array<i64: 256, 128>}, {pipeline_mode = #tpu.pipeline_mode<synchronous>, transform_indices = @transform_2, window_bounds = array<i64: 1, 128>}, {pipeline_mode = #tpu.pipeline_mode<synchronous>, transform_indices = @transform_3, window_bounds = array<i64: 128, 256>}, {pipeline_mode = #tpu.pipeline_mode<synchronous>, transform_indices = @transform_4, window_bounds = array<i64: 1, 256>}, {transform_indices = @transform_5, window_bounds = array<i64: 128, 128>}, {transform_indices = @transform_6, window_bounds = array<i64: 128, 256>}]} {
    %c0 = arith.constant 0 : index
    %c0_0 = arith.constant 0 : index
    %0 = vector.load %arg1[%c0, %c0_0] : memref<128x256xf32, #tpu.memory_space<vmem>>, vector<128x256xf32>
    %1 = arith.truncf %0 : vector<128x256xf32> to vector<128x256xbf16>
    %c0_1 = arith.constant 0 : index
    %c0_2 = arith.constant 0 : index
    %2 = vector.load %arg2[%c0_1, %c0_2] : memref<256x128xbf16, #tpu.memory_space<vmem>>, vector<256x128xbf16>
    %cst = arith.constant dense<0.000000e+00> : vector<128x128xf32>
    %3 = tpu.matmul %1, %2, %cst {dimension_numbers = #tpu.dot_dimension_numbers<[1], [0], [0], [1], [0, 0, 1, 1], [], []>} : vector<128x256xbf16>, vector<256x128xbf16>, vector<128x128xf32> -> vector<128x128xf32>
    %c0_3 = arith.constant 0 : index
    %c0_4 = arith.constant 0 : index
    %4 = vector.load %arg3[%c0_3, %c0_4] : memref<1x128xf32, #tpu.memory_space<vmem>>, vector<1x128xf32>
    %5 = vector.broadcast %4 : vector<1x128xf32> to vector<128x128xf32>
    %6 = arith.addf %3, %5 : vector<128x128xf32>
    %cst_5 = arith.constant 0.000000e+00 : f32
    %7 = vector.broadcast %cst_5 : f32 to vector<128x128xf32>
    %8 = arith.cmpf oge, %6, %7 : vector<128x128xf32>
    %cst_6 = arith.constant 0.00999999977 : f32
    %9 = vector.broadcast %cst_6 : f32 to vector<128x128xf32>
    %10 = arith.mulf %9, %6 : vector<128x128xf32>
    %11 = arith.select %8, %6, %10 : vector<128x128xi1>, vector<128x128xf32>
    %c0_7 = arith.constant 0 : index
    %c0_8 = arith.constant 0 : index
    %12 = vector.load %arg6[%c0_7, %c0_8] : memref<128x128xf32, #tpu.memory_space<vmem>>, vector<128x128xf32>
    tpu.vector_store %arg6[%c0_7, %c0_8], %11 {strides = array<i32>} : memref<128x128xf32, #tpu.memory_space<vmem>>, vector<128x128xf32>,
    %13 = arith.truncf %11 : vector<128x128xf32> to vector<128x128xbf16>
    %c0_9 = arith.constant 0 : index
    %c0_10 = arith.constant 0 : index
    %14 = vector.load %arg4[%c0_9, %c0_10] : memref<128x256xbf16, #tpu.memory_space<vmem>>, vector<128x256xbf16>
    %cst_11 = arith.constant dense<0.000000e+00> : vector<128x256xf32>
    %15 = tpu.matmul %13, %14, %cst_11 {dimension_numbers = #tpu.dot_dimension_numbers<[1], [0], [0], [1], [0, 0, 1, 1], [], []>} : vector<128x128xbf16>, vector<128x256xbf16>, vector<128x256xf32> -> vector<128x256xf32>
    %c0_12 = arith.constant 0 : index
    %c0_13 = arith.constant 0 : index
    %16 = vector.load %arg5[%c0_12, %c0_13] : memref<1x256xf32, #tpu.memory_space<vmem>>, vector<1x256xf32>
    %17 = vector.broadcast %16 : vector<1x256xf32> to vector<128x256xf32>
    %18 = arith.addf %15, %17 : vector<128x256xf32>
    %c0_14 = arith.constant 0 : index
    %c0_15 = arith.constant 0 : index
    %19 = vector.load %arg7[%c0_14, %c0_15] : memref<128x256xf32, #tpu.memory_space<vmem>>, vector<128x256xf32>
    tpu.vector_store %arg7[%c0_14, %c0_15], %18 {strides = array<i32>} : memref<128x256xf32, #tpu.memory_space<vmem>>, vector<128x256xf32>,
    return
  }
  func.func @transform_0(%arg0: i32) -> (i32, i32) {
    %c0_i32 = arith.constant 0 : i32
    %c0_i32_0 = arith.constant 0 : i32
    return %arg0, %c0_i32 : i32, i32
  }
  func.func @transform_1(%arg0: i32) -> (i32, i32) {
    %c0_i32 = arith.constant 0 : i32
    %c0_i32_0 = arith.constant 0 : i32
    %c0_i32_1 = arith.constant 0 : i32
    return %c0_i32, %c0_i32_0 : i32, i32
  }
  func.func @transform_2(%arg0: i32) -> (i32, i32) {
    %c0_i32 = arith.constant 0 : i32
    %c0_i32_0 = arith.constant 0 : i32
    %c0_i32_1 = arith.constant 0 : i32
    return %c0_i32, %c0_i32_0 : i32, i32
  }
  func.func @transform_3(%arg0: i32) -> (i32, i32) {
    %c0_i32 = arith.constant 0 : i32
    %c0_i32_0 = arith.constant 0 : i32
    %c0_i32_1 = arith.constant 0 : i32
    return %c0_i32, %c0_i32_0 : i32, i32
  }
  func.func @transform_4(%arg0: i32) -> (i32, i32) {
    %c0_i32 = arith.constant 0 : i32
    %c0_i32_0 = arith.constant 0 : i32
    %c0_i32_1 = arith.constant 0 : i32
    return %c0_i32, %c0_i32_0 : i32, i32
  }
  func.func @transform_5(%arg0: i32) -> (i32, i32) {
    %c0_i32 = arith.constant 0 : i32
    %c0_i32_0 = arith.constant 0 : i32
    return %arg0, %c0_i32 : i32, i32
  }
  func.func @transform_6(%arg0: i32) -> (i32, i32) {
    %c0_i32 = arith.constant 0 : i32
    %c0_i32_0 = arith.constant 0 : i32
    return %arg0, %c0_i32 : i32, i32
  }
}

</mosaic_0001>

<llo_original>
// kernel: tpu_custom_call.1
$region0: #{tpu_custom_call.1}
  #allocation0 [shape = 'u32[]', space=smem, size = 0x4, offset = 0x4, fixed_abs, tag = 'smem constant byte address 0x4 - core index']
  #allocation1 [shape = 'u32[144,128]{1,0:T(1,128)}', space=vmem, size = 0x12000, scoped, tag = 'internal scratch']
  %s0 = inlined_call_operand.hbm [shape: f32[256,256], index: 0, kind: input, shape index: {}]
  %s1 = inlined_call_operand.hbm [shape: bf16[256,128], index: 1, kind: input, shape index: {}]
  %s2 = inlined_call_operand.vmem [shape: f32[1,128], index: 2, kind: input, shape index: {}]
  %s3 = inlined_call_operand.hbm [shape: bf16[128,256], index: 3, kind: input, shape index: {}]
  %s4 = inlined_call_operand.vmem [shape: f32[1,256], index: 4, kind: input, shape index: {}]
  %s5 = inlined_call_operand.hbm [shape: f32[256,128], index: 5, kind: output, shape index: {0}]
  %s6 = inlined_call_operand.hbm [shape: f32[256,256], index: 6, kind: output, shape index: {1}]
  %7 = xla_tuple %s5, %s6
  %s8 = sld [smem:[#allocation0]]
  $region73: #{tpu_custom_call.1} parent=0
    _
  %s10 = ssub.s32 1, %s8
  %s11 = scalar_select 0, %s10, %s8
  $region1: #{tpu_custom_call.1} parent=0
    #allocation2 [shape = 'u8[262144]{0}', space=vmem, size = 0x40000, scoped, tag = 'input window, operand 0']
    #allocation3 [shape = 's32[2]{0}', space=sflag, size = 0x8, scoped, tag = 'scoped memory for tpu_custom_call.1']
    #allocation4 [shape = 's32[2]{0}', space=sflag, size = 0x8, scoped, tag = 'scoped memory for tpu_custom_call.1']
    #allocation5 [shape = 'u8[65536]{0}', space=vmem, size = 0x10000, scoped, tag = 'input window, operand 1, single buffered']
    #allocation6 [shape = 's32[1]{0}', space=sflag, size = 0x4, scoped, tag = 'scoped memory for tpu_custom_call.1']
    #allocation7 [shape = 'u8[65536]{0}', space=vmem, size = 0x10000, scoped, tag = 'input window, operand 3, single buffered']
    #allocation8 [shape = 'u8[131072]{0}', space=vmem, size = 0x20000, scoped, tag = 'output window, operand 0']
    #allocation9 [shape = 'u8[262144]{0}', space=vmem, size = 0x40000, scoped, tag = 'output window, operand 1']
    #allocation10 [shape = 's32[2]{0}', space=sflag, size = 0x8, scoped, tag = 'scoped memory for tpu_custom_call.1']
    %12 = vsyncpa [#allocation3], 0
    %s13 = scalar_lea.sflag [#allocation3], 1
    %14 = vsyncpa %s13, 0
    %15 = vsyncpa [#allocation6], 0
    %16 = vsyncpa [#allocation4], 0
    %s17 = scalar_lea.sflag [#allocation4], 1
    %18 = vsyncpa %s17, 0
    %19 = vsyncpa [#allocation10], 0
    %s20 = scalar_lea.sflag [#allocation10], 1
    %21 = vsyncpa %s20, 0
    loop: start=0, step=1, limit=4
    $region2: #{tpu_custom_call.1} parent=1 // loop_pre_header
      _
    $region3: #{tpu_custom_call.1} parent=1 // loop_header
      %s23 = sphi 0, %s27
      %p24 = scmp.ge.s32.totalorder %s23, 4
      %s33 = sphi 0, %s35
      %s36 = sphi 0, %s33
      %s37 = sphi 0, %s36
      %s53 = sphi 0, %s37
      %s57 = sphi 0, %s57
      %s59 = sphi 0, %s57
      %s60 = sphi 0, %s59
      %s74 = sphi 0, %s60
      %s78 = sphi 0, %s78
      %s80 = sphi 0, %s78
      %s81 = sphi 0, %s80
      %s95 = sphi 0, %s81
      %s99 = sphi 0, %s99
      %s101 = sphi 0, %s99
      %s102 = sphi 0, %s101
      %s116 = sphi 0, %s102
      %s120 = sphi 0, %s120
      %s122 = sphi 0, %s120
      %s123 = sphi 0, %s122
      %s137 = sphi 0, %s123
      %s143 = sphi 0, %s145
      %s146 = sphi 0, %s143
      %s147 = sphi 0, %s146
      %s163 = sphi 0, %s147
      %s169 = sphi 0, %s171
      %s172 = sphi 0, %s169
      %s173 = sphi 0, %s172
      %s189 = sphi 0, %s173
    $region4: #{tpu_custom_call.1} parent=1 // loop_header_branch
      %26 = sbr.rel (%p24) target = $region8
    $region5: #{tpu_custom_call.1} parent=1 // loop_body
      %s28 = ssub.s32 %s23, 1
      %s29 = ssub.s32 %s23, 2
      %s30 = sadd.s32 %s23, 1
      %s31 = ssub.s32 %s23, %s30
      %p32 = scmp.eq.s32.totalorder %s31, 0
      %s34 = sadd.s32 %s33, 1
      %s35 = scalar_select %p32, %s33, %s34
      %p38 = pneg %p32
      %p39 = scmp.eq.s32.totalorder %s23, 1
      %p40 = por %p38, %p39
      %p41 = scmp.ne.s32.totalorder %s33, %s36
      %p42 = scmp.eq.s32.totalorder %s23, 0
      %p43 = por %p41, %p42
      %p44 = scmp.ne.s32.totalorder %s33, %s36
      %p45 = scmp.eq.s32.totalorder %s28, 1
      %p46 = por %p44, %p45
      %p47 = scmp.ne.s32.totalorder %s36, %s37
      %p48 = scmp.eq.s32.totalorder %s28, 0
      %p49 = por %p47, %p48
      %p50 = scmp.ne.s32.totalorder %s36, %s37
      %p51 = scmp.eq.s32.totalorder %s29, 1
      %p52 = por %p50, %p51
      %p54 = scmp.ne.s32.totalorder %s37, %s53
      %p55 = scmp.eq.s32.totalorder %s29, 0
      %p56 = por %p54, %p55
      %s58 = sadd.s32 %s57, 1
      %p61 = scmp.eq.s32.totalorder %s23, 1
      %p62 = scmp.ne.s32.totalorder %s57, %s59
      %p63 = scmp.eq.s32.totalorder %s23, 0
      %p64 = por %p62, %p63
      %p65 = scmp.ne.s32.totalorder %s57, %s59
      %p66 = scmp.eq.s32.totalorder %s28, 1
      %p67 = por %p65, %p66
      %p68 = scmp.ne.s32.totalorder %s59, %s60
      %p69 = scmp.eq.s32.totalorder %s28, 0
      %p70 = por %p68, %p69
      %p71 = scmp.ne.s32.totalorder %s59, %s60
      %p72 = scmp.eq.s32.totalorder %s29, 1
      %p73 = por %p71, %p72
      %p75 = scmp.ne.s32.totalorder %s60, %s74
      %p76 = scmp.eq.s32.totalorder %s29, 0
      %p77 = por %p75, %p76
      %s79 = sadd.s32 %s78, 1
      %p82 = scmp.eq.s32.totalorder %s23, 1
      %p83 = scmp.ne.s32.totalorder %s78, %s80
      %p84 = scmp.eq.s32.totalorder %s23, 0
      %p85 = por %p83, %p84
      %p86 = scmp.ne.s32.totalorder %s78, %s80
      %p87 = scmp.eq.s32.totalorder %s28, 1
      %p88 = por %p86, %p87
      %p89 = scmp.ne.s32.totalorder %s80, %s81
      %p90 = scmp.eq.s32.totalorder %s28, 0
      %p91 = por %p89, %p90
      %p92 = scmp.ne.s32.totalorder %s80, %s81
      %p93 = scmp.eq.s32.totalorder %s29, 1
      %p94 = por %p92, %p93
      %p96 = scmp.ne.s32.totalorder %s81, %s95
      %p97 = scmp.eq.s32.totalorder %s29, 0
      %p98 = por %p96, %p97
      %s100 = sadd.s32 %s99, 1
      %p103 = scmp.eq.s32.totalorder %s23, 1
      %p104 = scmp.ne.s32.totalorder %s99, %s101
      %p105 = scmp.eq.s32.totalorder %s23, 0
      %p106 = por %p104, %p105
      %p107 = scmp.ne.s32.totalorder %s99, %s101
      %p108 = scmp.eq.s32.totalorder %s28, 1
      %p109 = por %p107, %p108
      %p110 = scmp.ne.s32.totalorder %s101, %s102
      %p111 = scmp.eq.s32.totalorder %s28, 0
      %p112 = por %p110, %p111
      %p113 = scmp.ne.s32.totalorder %s101, %s102
      %p114 = scmp.eq.s32.totalorder %s29, 1
      %p115 = por %p113, %p114
      %p117 = scmp.ne.s32.totalorder %s102, %s116
      %p118 = scmp.eq.s32.totalorder %s29, 0
      %p119 = por %p117, %p118
      %s121 = sadd.s32 %s120, 1
      %p124 = scmp.eq.s32.totalorder %s23, 1
      %p125 = scmp.ne.s32.totalorder %s120, %s122
      %p126 = scmp.eq.s32.totalorder %s23, 0
      %p127 = por %p125, %p126
      %p128 = scmp.ne.s32.totalorder %s120, %s122
      %p129 = scmp.eq.s32.totalorder %s28, 1
      %p130 = por %p128, %p129
      %p131 = scmp.ne.s32.totalorder %s122, %s123
      %p132 = scmp.eq.s32.totalorder %s28, 0
      %p133 = por %p131, %p132
      %p134 = scmp.ne.s32.totalorder %s122, %s123
      %p135 = scmp.eq.s32.totalorder %s29, 1
      %p136 = por %p134, %p135
      %p138 = scmp.ne.s32.totalorder %s123, %s137
      %p139 = scmp.eq.s32.totalorder %s29, 0
      %p140 = por %p138, %p139
      %s141 = ssub.s32 %s23, %s30
      %p142 = scmp.eq.s32.totalorder %s141, 0
      %s144 = sadd.s32 %s143, 1
      %s145 = scalar_select %p142, %s143, %s144
      %p148 = pneg %p142
      %p149 = scmp.eq.s32.totalorder %s23, 1
      %p150 = por %p148, %p149
      %p151 = scmp.ne.s32.totalorder %s143, %s146
      %p152 = scmp.eq.s32.totalorder %s23, 0
      %p153 = por %p151, %p152
      %p154 = scmp.ne.s32.totalorder %s143, %s146
      %p155 = scmp.eq.s32.totalorder %s28, 1
      %p156 = por %p154, %p155
      %p157 = scmp.ne.s32.totalorder %s146, %s147
      %p158 = scmp.eq.s32.totalorder %s28, 0
      %p159 = por %p157, %p158
      %p160 = scmp.ne.s32.totalorder %s146, %s147
      %p161 = scmp.eq.s32.totalorder %s29, 1
      %p162 = por %p160, %p161
      %p164 = scmp.ne.s32.totalorder %s147, %s163
      %p165 = scmp.eq.s32.totalorder %s29, 0
      %p166 = por %p164, %p165
      %s167 = ssub.s32 %s23, %s30
      %p168 = scmp.eq.s32.totalorder %s167, 0
      %s170 = sadd.s32 %s169, 1
      %s171 = scalar_select %p168, %s169, %s170
      %p174 = pneg %p168
      %p175 = scmp.eq.s32.totalorder %s23, 1
      %p176 = por %p174, %p175
      %p177 = scmp.ne.s32.totalorder %s169, %s172
      %p178 = scmp.eq.s32.totalorder %s23, 0
      %p179 = por %p177, %p178
      %p180 = scmp.ne.s32.totalorder %s169, %s172
      %p181 = scmp.eq.s32.totalorder %s28, 1
      %p182 = por %p180, %p181
      %p183 = scmp.ne.s32.totalorder %s172, %s173
      %p184 = scmp.eq.s32.totalorder %s28, 0
      %p185 = por %p183, %p184
      %p186 = scmp.ne.s32.totalorder %s172, %s173
      %p187 = scmp.eq.s32.totalorder %s29, 1
      %p188 = por %p186, %p187
      %p190 = scmp.ne.s32.totalorder %s173, %s189
      %p191 = scmp.eq.s32.totalorder %s29, 0
      %p192 = por %p190, %p191
      %p193 = scmp.le.s32.totalorder 1, %s23
      %p194 = scmp.lt.s32.totalorder %s23, 3
      %p195 = pnand %p193, %p194
      %p196 = pneg %p195
      // Predicated region
      $region9: #{tpu_custom_call.1} parent=5 // pred_check
        _
      $region10: #{tpu_custom_call.1} parent=5 // pred_check_branch
        %198 = sbr.rel (%p195) target = $region12
      $region11: #{tpu_custom_call.1} parent=5 // pred_region
        %s199 = ssub.s32 %s23, 1
        // Predicated region
        $region13: #{tpu_custom_call.1} parent=11 // pred_check
          %p200 = pneg %p70
        $region14: #{tpu_custom_call.1} parent=11 // pred_check_branch
          %202 = sbr.rel (%p200) target = $region16
        $region15: #{tpu_custom_call.1} parent=11 // pred_region
          %s204 = ssub.s32 2048, 2048
          %205 = vsyncadd [#allocation6], %s204
          %s206 = sshll.u32 [#allocation5], 4
          %s207 = int_to_ptr.vmem [resolvable:$true] %s206
          %212 = dma.hbm_to_vmem [thread:$0]  %s1, 2048, %s207, [#allocation6], 64, 64, 4
        $region16: #{tpu_custom_call.1} parent=11 // pred_fallthru
          _
        // Predicated region
        $region17: #{tpu_custom_call.1} parent=11 // pred_check
          %p213 = pneg %p91
        $region18: #{tpu_custom_call.1} parent=11 // pred_check_branch
          %215 = sbr.rel (%p213) target = $region20
        $region19: #{tpu_custom_call.1} parent=11 // pred_region
          _
        $region20: #{tpu_custom_call.1} parent=11 // pred_fallthru
          _
        // Predicated region
        $region21: #{tpu_custom_call.1} parent=11 // pred_check
          %p216 = pneg %p112
        $region22: #{tpu_custom_call.1} parent=11 // pred_check_branch
          %218 = sbr.rel (%p216) target = $region24
        $region23: #{tpu_custom_call.1} parent=11 // pred_region
          %s220 = ssub.s32 2048, 2048
          %221 = vsyncadd [#allocation6], %s220
          %s222 = sshll.u32 [#allocation7], 4
          %s223 = int_to_ptr.vmem [resolvable:$true] %s222
          %228 = dma.hbm_to_vmem [thread:$0]  %s3, 2048, %s223, [#allocation6], 128, 128, 8
        $region24: #{tpu_custom_call.1} parent=11 // pred_fallthru
          _
        // Predicated region
        $region25: #{tpu_custom_call.1} parent=11 // pred_check
          %p229 = pneg %p133
        $region26: #{tpu_custom_call.1} parent=11 // pred_check_branch
          %231 = sbr.rel (%p229) target = $region28
        $region27: #{tpu_custom_call.1} parent=11 // pred_region
          _
        $region28: #{tpu_custom_call.1} parent=11 // pred_fallthru
          _
      $region12: #{tpu_custom_call.1} parent=5 // pred_fallthru
        _
      %p232 = scmp.lt.s32.totalorder %s23, 2
      // Predicated region
      $region29: #{tpu_custom_call.1} parent=5 // pred_check
        %p233 = pneg %p232
      $region30: #{tpu_custom_call.1} parent=5 // pred_check_branch
        %235 = sbr.rel (%p233) target = $region32
      $region31: #{tpu_custom_call.1} parent=5 // pred_region
        // Predicated region
        $region33: #{tpu_custom_call.1} parent=31 // pred_check
          %p236 = pneg %p43
        $region34: #{tpu_custom_call.1} parent=31 // pred_check_branch
          %238 = sbr.rel (%p236) target = $region36
        $region35: #{tpu_custom_call.1} parent=31 // pred_region
          %s239 = sand.u32 %s33, 1
          %s240 = scalar_lea.sflag [#allocation3], %s239
          %s241 = sand.u32 %s33, 1
          %s242 = smul.addr %s241, 256
          %s243 = scalar_lea.vmem [#allocation2], %s242
          %s244 = smul.u32 16, %s23
          %s246 = ssub.s32 4096, 4096
          %247 = vsyncadd %s240, %s246
          %s248 = smul.addr %s244, 2
          %s249 = smul.addr %s248, 128
          %s250 = scalar_lea.hbm %s0, %s249
          %s251 = sshll.u32 %s243, 4
          %s252 = int_to_ptr.vmem [resolvable:$true] %s251
          %257 = dma.hbm_to_vmem [thread:$0]  %s250, 4096, %s252, %s240, 256, 256, 16
        $region36: #{tpu_custom_call.1} parent=31 // pred_fallthru
          _
      $region32: #{tpu_custom_call.1} parent=5 // pred_fallthru
        _
      %p258 = scmp.le.s32.totalorder 1, %s23
      %p259 = scmp.lt.s32.totalorder %s23, 3
      %p260 = pnand %p258, %p259
      %p261 = pneg %p260
      // Predicated region
      $region37: #{tpu_custom_call.1} parent=5 // pred_check
        _
      $region38: #{tpu_custom_call.1} parent=5 // pred_check_branch
        %263 = sbr.rel (%p260) target = $region40
      $region39: #{tpu_custom_call.1} parent=5 // pred_region
        %s264 = ssub.s32 %s23, 1
        %s265 = sand.u32 %s36, 1
        %s266 = scalar_lea.sflag [#allocation3], %s265
        %s267 = sand.u32 %s36, 1
        %s268 = smul.addr %s267, 256
        %s269 = scalar_lea.vmem [#allocation2], %s268
        // Predicated region
        $region41: #{tpu_custom_call.1} parent=39 // pred_check
          %p270 = pneg %p49
        $region42: #{tpu_custom_call.1} parent=39 // pred_check_branch
          %272 = sbr.rel (%p270) target = $region44
        $region43: #{tpu_custom_call.1} parent=39 // pred_region
          %273 = dma.done %s266, 4096
        $region44: #{tpu_custom_call.1} parent=39 // pred_fallthru
          _
        // Predicated region
        $region45: #{tpu_custom_call.1} parent=39 // pred_check
          %p274 = pneg %p70
        $region46: #{tpu_custom_call.1} parent=39 // pred_check_branch
          %276 = sbr.rel (%p274) target = $region48
        $region47: #{tpu_custom_call.1} parent=39 // pred_region
          %277 = dma.done [#allocation6], 2048
        $region48: #{tpu_custom_call.1} parent=39 // pred_fallthru
          _
        // Predicated region
        $region49: #{tpu_custom_call.1} parent=39 // pred_check
          %p278 = pneg %p112
        $region50: #{tpu_custom_call.1} parent=39 // pred_check_branch
          %280 = sbr.rel (%p278) target = $region52
        $region51: #{tpu_custom_call.1} parent=39 // pred_region
          %281 = dma.done [#allocation6], 2048
        $region52: #{tpu_custom_call.1} parent=39 // pred_fallthru
          _
        %s282 = sand.u32 %s36, 1
        %s283 = scalar_lea.sflag [#allocation3], %s282
        %s284 = sand.u32 %s36, 1
        %s285 = smul.addr %s284, 256
        %s286 = scalar_lea.vmem [#allocation2], %s285
        %p287 = pneg %p49
        %p288 = pneg %p46
        %p289 = pneg %p70
        %p290 = pneg %p67
        %p291 = pneg %p91
        %p292 = pneg %p88
        %p293 = pneg %p112
        %p294 = pneg %p109
        %p295 = pneg %p133
        %p296 = pneg %p130
        %p297 = pneg %p159
        %p298 = pneg %p156
        %s299 = sand.u32 %s146, 1
        %s300 = scalar_lea.sflag [#allocation4], %s299
        %s301 = sand.u32 %s146, 1
        %s302 = smul.addr %s301, 128
        %s303 = scalar_lea.vmem [#allocation8], %s302
        %p304 = pneg %p185
        %p305 = pneg %p182
        %s306 = sand.u32 %s172, 1
        %s307 = scalar_lea.sflag [#allocation10], %s306
        %s308 = sand.u32 %s172, 1
        %s309 = smul.addr %s308, 256
        %s310 = scalar_lea.vmem [#allocation9], %s309
        %s311 = smul.u32 16, %s28
        %s312 = smul.u32 16, %s28
        %s313 = smul.u32 16, %s28
        %v315 = vld [vmem:[%s269] sm:$0xff]
        %v316 = vld [vmem:[%s269 + $0x8] sm:$0xff]
        %v317 = vld [vmem:[%s269 + $0x10] sm:$0xff]
        %v318 = vld [vmem:[%s269 + $0x18] sm:$0xff]
        %v319 = vld [vmem:[%s269 + $0x20] sm:$0xff]
        %v320 = vld [vmem:[%s269 + $0x28] sm:$0xff]
        %v321 = vld [vmem:[%s269 + $0x30] sm:$0xff]
        %v322 = vld [vmem:[%s269 + $0x38] sm:$0xff]
        %v323 = vld [vmem:[%s269 + $0x40] sm:$0xff]
        %v324 = vld [vmem:[%s269 + $0x48] sm:$0xff]
        %v325 = vld [vmem:[%s269 + $0x50] sm:$0xff]
        %v326 = vld [vmem:[%s269 + $0x58] sm:$0xff]
        %v327 = vld [vmem:[%s269 + $0x60] sm:$0xff]
        %v328 = vld [vmem:[%s269 + $0x68] sm:$0xff]
        %v329 = vld [vmem:[%s269 + $0x70] sm:$0xff]
        %v330 = vld [vmem:[%s269 + $0x78] sm:$0xff]
        %v331 = vld [vmem:[%s269 + $0x80] sm:$0xff]
        %v332 = vld [vmem:[%s269 + $0x88] sm:$0xff]
        %v333 = vld [vmem:[%s269 + $0x90] sm:$0xff]
        %v334 = vld [vmem:[%s269 + $0x98] sm:$0xff]
        %v335 = vld [vmem:[%s269 + $0xa0] sm:$0xff]
        %v336 = vld [vmem:[%s269 + $0xa8] sm:$0xff]
        %v337 = vld [vmem:[%s269 + $0xb0] sm:$0xff]
        %v338 = vld [vmem:[%s269 + $0xb8] sm:$0xff]
        %v339 = vld [vmem:[%s269 + $0xc0] sm:$0xff]
        %v340 = vld [vmem:[%s269 + $0xc8] sm:$0xff]
        %v341 = vld [vmem:[%s269 + $0xd0] sm:$0xff]
        %v342 = vld [vmem:[%s269 + $0xd8] sm:$0xff]
        %v343 = vld [vmem:[%s269 + $0xe0] sm:$0xff]
        %v344 = vld [vmem:[%s269 + $0xe8] sm:$0xff]
        %v345 = vld [vmem:[%s269 + $0xf0] sm:$0xff]
        %v346 = vld [vmem:[%s269 + $0xf8] sm:$0xff]
        %v347 = vpack.c.bf16 %v317, %v315
        %v348 = vpack.c.bf16 %v318, %v316
        %v349 = vpack.c.bf16 %v321, %v319
        %v350 = vpack.c.bf16 %v322, %v320
        %v351 = vpack.c.bf16 %v325, %v323
        %v352 = vpack.c.bf16 %v326, %v324
        %v353 = vpack.c.bf16 %v329, %v327
        %v354 = vpack.c.bf16 %v330, %v328
        %v355 = vpack.c.bf16 %v333, %v331
        %v356 = vpack.c.bf16 %v334, %v332
        %v357 = vpack.c.bf16 %v337, %v335
        %v358 = vpack.c.bf16 %v338, %v336
        %v359 = vpack.c.bf16 %v341, %v339
        %v360 = vpack.c.bf16 %v342, %v340
        %v361 = vpack.c.bf16 %v345, %v343
        %v362 = vpack.c.bf16 %v346, %v344
        %v363 = vld [vmem:[#allocation5] sm:$0xf]
        %v364 = vld [vmem:[#allocation5 + $0x4] sm:$0xf]
        %v365 = vld [vmem:[#allocation5 + $0x8] sm:$0xf]
        %v366 = vld [vmem:[#allocation5 + $0xc] sm:$0xf]
        %v367 = vld [vmem:[#allocation5 + $0x10] sm:$0xf]
        %v368 = vld [vmem:[#allocation5 + $0x14] sm:$0xf]
        %v369 = vld [vmem:[#allocation5 + $0x18] sm:$0xf]
        %v370 = vld [vmem:[#allocation5 + $0x1c] sm:$0xf]
        %v371 = vld [vmem:[#allocation5 + $0x20] sm:$0xf]
        %v372 = vld [vmem:[#allocation5 + $0x24] sm:$0xf]
        %v373 = vld [vmem:[#allocation5 + $0x28] sm:$0xf]
        %v374 = vld [vmem:[#allocation5 + $0x2c] sm:$0xf]
        %v375 = vld [vmem:[#allocation5 + $0x30] sm:$0xf]
        %v376 = vld [vmem:[#allocation5 + $0x34] sm:$0xf]
        %v377 = vld [vmem:[#allocation5 + $0x38] sm:$0xf]
        %v378 = vld [vmem:[#allocation5 + $0x3c] sm:$0xf]
        %v379 = vld [vmem:[#allocation5 + $0x40] sm:$0xf]
        %v380 = vld [vmem:[#allocation5 + $0x44] sm:$0xf]
        %v381 = vld [vmem:[#allocation5 + $0x48] sm:$0xf]
        %v382 = vld [vmem:[#allocation5 + $0x4c] sm:$0xf]
        %v383 = vld [vmem:[#allocation5 + $0x50] sm:$0xf]
        %v384 = vld [vmem:[#allocation5 + $0x54] sm:$0xf]
        %v385 = vld [vmem:[#allocation5 + $0x58] sm:$0xf]
        %v386 = vld [vmem:[#allocation5 + $0x5c] sm:$0xf]
        %v387 = vld [vmem:[#allocation5 + $0x60] sm:$0xf]
        %v388 = vld [vmem:[#allocation5 + $0x64] sm:$0xf]
        %v389 = vld [vmem:[#allocation5 + $0x68] sm:$0xf]
        %v390 = vld [vmem:[#allocation5 + $0x6c] sm:$0xf]
        %v391 = vld [vmem:[#allocation5 + $0x70] sm:$0xf]
        %v392 = vld [vmem:[#allocation5 + $0x74] sm:$0xf]
        %v393 = vld [vmem:[#allocation5 + $0x78] sm:$0xf]
        %v394 = vld [vmem:[#allocation5 + $0x7c] sm:$0xf]
        %v395 = vld [vmem:[%s2] sm:$0x1]
        %v397 = vlaneseq
        %v398 = vshrl.u32 %v397, 7
        %v399 = vsub.s32 0, %v398
        %v400 = vrot.slane %v395, %v399
        %v434 = vunpack.c.l.b16 %v363
        %v435 = vunpack.c.l.b16 %v364
        %v436 = vunpack.c.l.b16 %v365
        %v437 = vunpack.c.l.b16 %v366
        %v438 = vunpack.c.l.b16 %v367
        %v439 = vunpack.c.l.b16 %v368
        %v440 = vunpack.c.l.b16 %v369
        %v441 = vunpack.c.l.b16 %v370
        %v442 = vunpack.c.l.b16 %v371
        %v443 = vunpack.c.l.b16 %v372
        %v444 = vunpack.c.l.b16 %v373
        %v445 = vunpack.c.l.b16 %v374
        %v446 = vunpack.c.l.b16 %v375
        %v447 = vunpack.c.l.b16 %v376
        %v448 = vunpack.c.l.b16 %v377
        %v449 = vunpack.c.l.b16 %v378
        %v450 = vunpack.c.l.b16 %v379
        %v451 = vunpack.c.l.b16 %v380
        %v452 = vunpack.c.l.b16 %v381
        %v453 = vunpack.c.l.b16 %v382
        %v454 = vunpack.c.l.b16 %v383
        %v455 = vunpack.c.l.b16 %v384
        %v456 = vunpack.c.l.b16 %v385
        %v457 = vunpack.c.l.b16 %v386
        %v458 = vunpack.c.l.b16 %v387
        %v459 = vunpack.c.l.b16 %v388
        %v460 = vunpack.c.l.b16 %v389
        %v461 = vunpack.c.l.b16 %v390
        %v462 = vunpack.c.l.b16 %v391
        %v463 = vunpack.c.l.b16 %v392
        %v464 = vunpack.c.l.b16 %v393
        %v465 = vunpack.c.l.b16 %v394
        %v466 = vpack.c.b16 %v435, %v434
        %v467 = vpack.c.b16 %v437, %v436
        %v468 = vpack.c.b16 %v439, %v438
        %v469 = vpack.c.b16 %v441, %v440
        %v470 = vpack.c.b16 %v443, %v442
        %v471 = vpack.c.b16 %v445, %v444
        %v472 = vpack.c.b16 %v447, %v446
        %v473 = vpack.c.b16 %v449, %v448
        %v474 = vpack.c.b16 %v451, %v450
        %v475 = vpack.c.b16 %v453, %v452
        %v476 = vpack.c.b16 %v455, %v454
        %v477 = vpack.c.b16 %v457, %v456
        %v478 = vpack.c.b16 %v459, %v458
        %v479 = vpack.c.b16 %v461, %v460
        %v480 = vpack.c.b16 %v463, %v462
        %v481 = vpack.c.b16 %v465, %v464
        %498 = vmatprep.subr.bf16.mxu0 0
        %499 = vmatpush1.bf16.msra.mxu0 %v466
        %500 = vmatprep.subr.bf16.mxu0 0
        %501 = vmatpush1.bf16.msra.mxu0 %v467
        %502 = vmatprep.subr.bf16.mxu0 0
        %503 = vmatpush1.bf16.msra.mxu0 %v468
        %504 = vmatprep.subr.bf16.mxu0 0
        %505 = vmatpush1.bf16.msra.mxu0 %v469
        %506 = vmatprep.subr.bf16.mxu0 0
        %507 = vmatpush1.bf16.msra.mxu0 %v470
        %508 = vmatprep.subr.bf16.mxu0 0
        %509 = vmatpush1.bf16.msra.mxu0 %v471
        %510 = vmatprep.subr.bf16.mxu0 0
        %511 = vmatpush1.bf16.msra.mxu0 %v472
        %512 = vmatprep.subr.bf16.mxu0 0
        %513 = vmatpush1.bf16.msra.mxu0 %v473
        %514 = vmatprep.subr.bf16.mxu0 0
        %515 = vmatpush1.bf16.msra.mxu0 %v474
        %516 = vmatprep.subr.bf16.mxu0 0
        %517 = vmatpush1.bf16.msra.mxu0 %v475
        %518 = vmatprep.subr.bf16.mxu0 0
        %519 = vmatpush1.bf16.msra.mxu0 %v476
        %520 = vmatprep.subr.bf16.mxu0 0
        %521 = vmatpush1.bf16.msra.mxu0 %v477
        %522 = vmatprep.subr.bf16.mxu0 0
        %523 = vmatpush1.bf16.msra.mxu0 %v478
        %524 = vmatprep.subr.bf16.mxu0 0
        %525 = vmatpush1.bf16.msra.mxu0 %v479
        %526 = vmatprep.subr.bf16.mxu0 0
        %527 = vmatpush1.bf16.msra.mxu0 %v480
        %528 = vmatprep.subr.bf16.mxu0 0
        %529 = vmatpush1.bf16.msra.mxu0 %v481
        %530 = vmatprep.mubr.bf16.mxu0 %v348
        %531 = vmatmul.mubr.bf16.gmra.mrb[0].mxu0 %v347
        %v532 = vpop.f32.mrb[0].mxu0
        %v533 = vadd.f32 %v400, %v532
        %v534 = vpop.f32.mrb[0].mxu0
        %v535 = vpop.f32.mrb[0].mxu0
        %v536 = vadd.f32 %v400, %v535
        %v537 = vpop.f32.mrb[0].mxu0
        %538 = vmatprep.mubr.bf16.mxu0 %v350
        %539 = vmatmul.mubr.bf16.gmra.mrb[0].mxu0 %v349
        %v540 = vpop.f32.mrb[0].mxu0
        %v541 = vadd.f32 %v400, %v540
        %v542 = vpop.f32.mrb[0].mxu0
        %v543 = vpop.f32.mrb[0].mxu0
        %v544 = vadd.f32 %v400, %v543
        %v545 = vpop.f32.mrb[0].mxu0
        %546 = vmatprep.mubr.bf16.mxu0 %v352
        %547 = vmatmul.mubr.bf16.gmra.mrb[0].mxu0 %v351
        %v548 = vpop.f32.mrb[0].mxu0
        %v549 = vadd.f32 %v400, %v548
        %v550 = vpop.f32.mrb[0].mxu0
        %v551 = vpop.f32.mrb[0].mxu0
        %v552 = vadd.f32 %v400, %v551
        %v553 = vpop.f32.mrb[0].mxu0
        %554 = vmatprep.mubr.bf16.mxu0 %v354
        %555 = vmatmul.mubr.bf16.gmra.mrb[0].mxu0 %v353
        %v556 = vpop.f32.mrb[0].mxu0
        %v557 = vadd.f32 %v400, %v556
        %v558 = vpop.f32.mrb[0].mxu0
        %v559 = vpop.f32.mrb[0].mxu0
        %v560 = vadd.f32 %v400, %v559
        %v561 = vpop.f32.mrb[0].mxu0
        %562 = vmatprep.mubr.bf16.mxu0 %v356
        %563 = vmatmul.mubr.bf16.gmra.mrb[0].mxu0 %v355
        %v564 = vpop.f32.mrb[0].mxu0
        %v565 = vadd.f32 %v400, %v564
        %v566 = vpop.f32.mrb[0].mxu0
        %v567 = vpop.f32.mrb[0].mxu0
        %v568 = vadd.f32 %v400, %v567
        %v569 = vpop.f32.mrb[0].mxu0
        %570 = vmatprep.mubr.bf16.mxu0 %v358
        %571 = vmatmul.mubr.bf16.gmra.mrb[0].mxu0 %v357
        %v572 = vpop.f32.mrb[0].mxu0
        %v573 = vadd.f32 %v400, %v572
        %v574 = vpop.f32.mrb[0].mxu0
        %v575 = vpop.f32.mrb[0].mxu0
        %v576 = vadd.f32 %v400, %v575
        %v577 = vpop.f32.mrb[0].mxu0
        %578 = vmatprep.mubr.bf16.mxu0 %v360
        %579 = vmatmul.mubr.bf16.gmra.mrb[0].mxu0 %v359
        %v580 = vpop.f32.mrb[0].mxu0
        %v581 = vadd.f32 %v400, %v580
        %v582 = vpop.f32.mrb[0].mxu0
        %v583 = vpop.f32.mrb[0].mxu0
        %v584 = vadd.f32 %v400, %v583
        %v585 = vpop.f32.mrb[0].mxu0
        %586 = vmatprep.mubr.bf16.mxu0 %v362
        %587 = vmatmul.mubr.bf16.gmra.mrb[0].mxu0 %v361
        %v588 = vpop.f32.mrb[0].mxu0
        %v589 = vadd.f32 %v400, %v588
        %v590 = vpop.f32.mrb[0].mxu0
        %v591 = vpop.f32.mrb[0].mxu0
        %v592 = vadd.f32 %v400, %v591
        %v593 = vpop.f32.mrb[0].mxu0
        %594 = vdwg.mxu0
        %vm595 = vcmp.ge.f32.partialorder %v533, 0.0
        %vm596 = vcmp.ge.f32.partialorder %v536, 0.0
        %vm597 = vcmp.ge.f32.partialorder %v541, 0.0
        %vm598 = vcmp.ge.f32.partialorder %v544, 0.0
        %vm599 = vcmp.ge.f32.partialorder %v549, 0.0
        %vm600 = vcmp.ge.f32.partialorder %v552, 0.0
        %vm601 = vcmp.ge.f32.partialorder %v557, 0.0
        %vm602 = vcmp.ge.f32.partialorder %v560, 0.0
        %vm603 = vcmp.ge.f32.partialorder %v565, 0.0
        %vm604 = vcmp.ge.f32.partialorder %v568, 0.0
        %vm605 = vcmp.ge.f32.partialorder %v573, 0.0
        %vm606 = vcmp.ge.f32.partialorder %v576, 0.0
        %vm607 = vcmp.ge.f32.partialorder %v581, 0.0
        %vm608 = vcmp.ge.f32.partialorder %v584, 0.0
        %vm609 = vcmp.ge.f32.partialorder %v589, 0.0
        %vm610 = vcmp.ge.f32.partialorder %v592, 0.0
        %v611 = vmul.f32 %v533, 0.01
        %v612 = vmul.f32 %v536, 0.01
        %v613 = vmul.f32 %v541, 0.01
        %v614 = vmul.f32 %v544, 0.01
        %v615 = vmul.f32 %v549, 0.01
        %v616 = vmul.f32 %v552, 0.01
        %v617 = vmul.f32 %v557, 0.01
        %v618 = vmul.f32 %v560, 0.01
        %v619 = vmul.f32 %v565, 0.01
        %v620 = vmul.f32 %v568, 0.01
        %v621 = vmul.f32 %v573, 0.01
        %v622 = vmul.f32 %v576, 0.01
        %v623 = vmul.f32 %v581, 0.01
        %v624 = vmul.f32 %v584, 0.01
        %v625 = vmul.f32 %v589, 0.01
        %v626 = vmul.f32 %v592, 0.01
        %v627 = vsel %vm595, %v533, %v611
        %v628 = vsel %vm596, %v536, %v612
        %v629 = vsel %vm597, %v541, %v613
        %v630 = vsel %vm598, %v544, %v614
        %v631 = vsel %vm599, %v549, %v615
        %v632 = vsel %vm600, %v552, %v616
        %v633 = vsel %vm601, %v557, %v617
        %v634 = vsel %vm602, %v560, %v618
        %v635 = vsel %vm603, %v565, %v619
        %v636 = vsel %vm604, %v568, %v620
        %v637 = vsel %vm605, %v573, %v621
        %v638 = vsel %vm606, %v576, %v622
        %v639 = vsel %vm607, %v581, %v623
        %v640 = vsel %vm608, %v584, %v624
        %v641 = vsel %vm609, %v589, %v625
        %v642 = vsel %vm610, %v592, %v626
        %643 = vst [vmem:[%s303] sm:$0xff] %v627
        %644 = vst [vmem:[%s303 + $0x8] sm:$0xff] %v628
        %645 = vst [vmem:[%s303 + $0x10] sm:$0xff] %v629
        %646 = vst [vmem:[%s303 + $0x18] sm:$0xff] %v630
        %647 = vst [vmem:[%s303 + $0x20] sm:$0xff] %v631
        %648 = vst [vmem:[%s303 + $0x28] sm:$0xff] %v632
        %649 = vst [vmem:[%s303 + $0x30] sm:$0xff] %v633
        %650 = vst [vmem:[%s303 + $0x38] sm:$0xff] %v634
        %651 = vst [vmem:[%s303 + $0x40] sm:$0xff] %v635
        %652 = vst [vmem:[%s303 + $0x48] sm:$0xff] %v636
        %653 = vst [vmem:[%s303 + $0x50] sm:$0xff] %v637
        %654 = vst [vmem:[%s303 + $0x58] sm:$0xff] %v638
        %655 = vst [vmem:[%s303 + $0x60] sm:$0xff] %v639
        %656 = vst [vmem:[%s303 + $0x68] sm:$0xff] %v640
        %657 = vst [vmem:[%s303 + $0x70] sm:$0xff] %v641
        %658 = vst [vmem:[%s303 + $0x78] sm:$0xff] %v642
        %v659 = vpack.c.bf16 %v628, %v627
        %v660 = vpack.c.bf16 %v630, %v629
        %v661 = vpack.c.bf16 %v632, %v631
        %v662 = vpack.c.bf16 %v634, %v633
        %v663 = vpack.c.bf16 %v636, %v635
        %v664 = vpack.c.bf16 %v638, %v637
        %v665 = vpack.c.bf16 %v640, %v639
        %v666 = vpack.c.bf16 %v642, %v641
        %v667 = vld [vmem:[#allocation7] sm:$0xff]
        %v668 = vld [vmem:[#allocation7 + $0x8] sm:$0xff]
        %v669 = vld [vmem:[#allocation7 + $0x10] sm:$0xff]
        %v670 = vld [vmem:[#allocation7 + $0x18] sm:$0xff]
        %v671 = vld [vmem:[#allocation7 + $0x20] sm:$0xff]
        %v672 = vld [vmem:[#allocation7 + $0x28] sm:$0xff]
        %v673 = vld [vmem:[#allocation7 + $0x30] sm:$0xff]
        %v674 = vld [vmem:[#allocation7 + $0x38] sm:$0xff]
        %v675 = vld [vmem:[#allocation7 + $0x40] sm:$0xff]
        %v676 = vld [vmem:[#allocation7 + $0x48] sm:$0xff]
        %v677 = vld [vmem:[#allocation7 + $0x50] sm:$0xff]
        %v678 = vld [vmem:[#allocation7 + $0x58] sm:$0xff]
        %v679 = vld [vmem:[#allocation7 + $0x60] sm:$0xff]
        %v680 = vld [vmem:[#allocation7 + $0x68] sm:$0xff]
        %v681 = vld [vmem:[#allocation7 + $0x70] sm:$0xff]
        %v682 = vld [vmem:[#allocation7 + $0x78] sm:$0xff]
        %v683 = vld [vmem:[%s4] sm:$0x3]
        %v685 = vlaneseq
        %v686 = vshrl.u32 %v685, 7
        %v687 = vsub.s32 0, %v686
        %v688 = vrot.slane %v683, %v687
        %v689 = vlaneseq
        %v690 = vshrl.u32 %v689, 7
        %v691 = vsub.s32 1, %v690
        %v692 = vrot.slane %v683, %v691
        %v711 = vunpack.c.l.b16 %v667
        %v712 = vunpack.c.h.b16 %v667
        %v713 = vunpack.c.l.b16 %v668
        %v714 = vunpack.c.h.b16 %v668
        %v715 = vunpack.c.l.b16 %v669
        %v716 = vunpack.c.h.b16 %v669
        %v717 = vunpack.c.l.b16 %v670
        %v718 = vunpack.c.h.b16 %v670
        %v719 = vunpack.c.l.b16 %v671
        %v720 = vunpack.c.h.b16 %v671
        %v721 = vunpack.c.l.b16 %v672
        %v722 = vunpack.c.h.b16 %v672
        %v723 = vunpack.c.l.b16 %v673
        %v724 = vunpack.c.h.b16 %v673
        %v725 = vunpack.c.l.b16 %v674
        %v726 = vunpack.c.h.b16 %v674
        %v727 = vunpack.c.l.b16 %v675
        %v728 = vunpack.c.h.b16 %v675
        %v729 = vunpack.c.l.b16 %v676
        %v730 = vunpack.c.h.b16 %v676
        %v731 = vunpack.c.l.b16 %v677
        %v732 = vunpack.c.h.b16 %v677
        %v733 = vunpack.c.l.b16 %v678
        %v734 = vunpack.c.h.b16 %v678
        %v735 = vunpack.c.l.b16 %v679
        %v736 = vunpack.c.h.b16 %v679
        %v737 = vunpack.c.l.b16 %v680
        %v738 = vunpack.c.h.b16 %v680
        %v739 = vunpack.c.l.b16 %v681
        %v740 = vunpack.c.h.b16 %v681
        %v741 = vunpack.c.l.b16 %v682
        %v742 = vunpack.c.h.b16 %v682
        %v743 = vpack.c.b16 %v713, %v711
        %v744 = vpack.c.b16 %v714, %v712
        %v745 = vpack.c.b16 %v717, %v715
        %v746 = vpack.c.b16 %v718, %v716
        %v747 = vpack.c.b16 %v721, %v719
        %v748 = vpack.c.b16 %v722, %v720
        %v749 = vpack.c.b16 %v725, %v723
        %v750 = vpack.c.b16 %v726, %v724
        %v751 = vpack.c.b16 %v729, %v727
        %v752 = vpack.c.b16 %v730, %v728
        %v753 = vpack.c.b16 %v733, %v731
        %v754 = vpack.c.b16 %v734, %v732
        %v755 = vpack.c.b16 %v737, %v735
        %v756 = vpack.c.b16 %v738, %v736
        %v757 = vpack.c.b16 %v741, %v739
        %v758 = vpack.c.b16 %v742, %v740
        %775 = vmatprep.subr.bf16.mxu0 %v744
        %776 = vmatpush1.bf16.msra.mxu0 %v743
        %777 = vmatprep.subr.bf16.mxu0 %v746
        %778 = vmatpush1.bf16.msra.mxu0 %v745
        %779 = vmatprep.subr.bf16.mxu0 %v748
        %780 = vmatpush1.bf16.msra.mxu0 %v747
        %781 = vmatprep.subr.bf16.mxu0 %v750
        %782 = vmatpush1.bf16.msra.mxu0 %v749
        %783 = vmatprep.subr.bf16.mxu0 %v752
        %784 = vmatpush1.bf16.msra.mxu0 %v751
        %785 = vmatprep.subr.bf16.mxu0 %v754
        %786 = vmatpush1.bf16.msra.mxu0 %v753
        %787 = vmatprep.subr.bf16.mxu0 %v756
        %788 = vmatpush1.bf16.msra.mxu0 %v755
        %789 = vmatprep.subr.bf16.mxu0 %v758
        %790 = vmatpush1.bf16.msra.mxu0 %v757
        %791 = vmatprep.subr.bf16.mxu0 0
        %792 = vmatpush1.bf16.msra.mxu0 0
        %793 = vmatprep.subr.bf16.mxu0 0
        %794 = vmatpush1.bf16.msra.mxu0 0
        %795 = vmatprep.subr.bf16.mxu0 0
        %796 = vmatpush1.bf16.msra.mxu0 0
        %797 = vmatprep.subr.bf16.mxu0 0
        %798 = vmatpush1.bf16.msra.mxu0 0
        %799 = vmatprep.subr.bf16.mxu0 0
        %800 = vmatpush1.bf16.msra.mxu0 0
        %801 = vmatprep.subr.bf16.mxu0 0
        %802 = vmatpush1.bf16.msra.mxu0 0
        %803 = vmatprep.subr.bf16.mxu0 0
        %804 = vmatpush1.bf16.msra.mxu0 0
        %805 = vmatprep.subr.bf16.mxu0 0
        %806 = vmatpush1.bf16.msra.mxu0 0
        %807 = vmatprep.mubr.bf16.mxu0 0
        %808 = vmatmul.mubr.bf16.gmra.mrb[0].mxu0 %v659
        %v809 = vpop.f32.mrb[0].mxu0
        %v810 = vadd.f32 %v688, %v809
        %v811 = vpop.f32.mrb[0].mxu0
        %v812 = vadd.f32 %v692, %v811
        %v813 = vpop.f32.mrb[0].mxu0
        %v814 = vadd.f32 %v688, %v813
        %v815 = vpop.f32.mrb[0].mxu0
        %v816 = vadd.f32 %v692, %v815
        %817 = vmatprep.mubr.bf16.mxu0 0
        %818 = vmatmul.mubr.bf16.gmra.mrb[0].mxu0 %v660
        %v819 = vpop.f32.mrb[0].mxu0
        %v820 = vadd.f32 %v688, %v819
        %v821 = vpop.f32.mrb[0].mxu0
        %v822 = vadd.f32 %v692, %v821
        %v823 = vpop.f32.mrb[0].mxu0
        %v824 = vadd.f32 %v688, %v823
        %v825 = vpop.f32.mrb[0].mxu0
        %v826 = vadd.f32 %v692, %v825
        %827 = vmatprep.mubr.bf16.mxu0 0
        %828 = vmatmul.mubr.bf16.gmra.mrb[0].mxu0 %v661
        %v829 = vpop.f32.mrb[0].mxu0
        %v830 = vadd.f32 %v688, %v829
        %v831 = vpop.f32.mrb[0].mxu0
        %v832 = vadd.f32 %v692, %v831
        %v833 = vpop.f32.mrb[0].mxu0
        %v834 = vadd.f32 %v688, %v833
        %v835 = vpop.f32.mrb[0].mxu0
        %v836 = vadd.f32 %v692, %v835
        %837 = vmatprep.mubr.bf16.mxu0 0
        %838 = vmatmul.mubr.bf16.gmra.mrb[0].mxu0 %v662
        %v839 = vpop.f32.mrb[0].mxu0
        %v840 = vadd.f32 %v688, %v839
        %v841 = vpop.f32.mrb[0].mxu0
        %v842 = vadd.f32 %v692, %v841
        %v843 = vpop.f32.mrb[0].mxu0
        %v844 = vadd.f32 %v688, %v843
        %v845 = vpop.f32.mrb[0].mxu0
        %v846 = vadd.f32 %v692, %v845
        %847 = vmatprep.mubr.bf16.mxu0 0
        %848 = vmatmul.mubr.bf16.gmra.mrb[0].mxu0 %v663
        %v849 = vpop.f32.mrb[0].mxu0
        %v850 = vadd.f32 %v688, %v849
        %v851 = vpop.f32.mrb[0].mxu0
        %v852 = vadd.f32 %v692, %v851
        %v853 = vpop.f32.mrb[0].mxu0
        %v854 = vadd.f32 %v688, %v853
        %v855 = vpop.f32.mrb[0].mxu0
        %v856 = vadd.f32 %v692, %v855
        %857 = vmatprep.mubr.bf16.mxu0 0
        %858 = vmatmul.mubr.bf16.gmra.mrb[0].mxu0 %v664
        %v859 = vpop.f32.mrb[0].mxu0
        %v860 = vadd.f32 %v688, %v859
        %v861 = vpop.f32.mrb[0].mxu0
        %v862 = vadd.f32 %v692, %v861
        %v863 = vpop.f32.mrb[0].mxu0
        %v864 = vadd.f32 %v688, %v863
        %v865 = vpop.f32.mrb[0].mxu0
        %v866 = vadd.f32 %v692, %v865
        %867 = vmatprep.mubr.bf16.mxu0 0
        %868 = vmatmul.mubr.bf16.gmra.mrb[0].mxu0 %v665
        %v869 = vpop.f32.mrb[0].mxu0
        %v870 = vadd.f32 %v688, %v869
        %v871 = vpop.f32.mrb[0].mxu0
        %v872 = vadd.f32 %v692, %v871
        %v873 = vpop.f32.mrb[0].mxu0
        %v874 = vadd.f32 %v688, %v873
        %v875 = vpop.f32.mrb[0].mxu0
        %v876 = vadd.f32 %v692, %v875
        %877 = vmatprep.mubr.bf16.mxu0 0
        %878 = vmatmul.mubr.bf16.gmra.mrb[0].mxu0 %v666
        %v879 = vpop.f32.mrb[0].mxu0
        %v880 = vadd.f32 %v688, %v879
        %v881 = vpop.f32.mrb[0].mxu0
        %v882 = vadd.f32 %v692, %v881
        %v883 = vpop.f32.mrb[0].mxu0
        %v884 = vadd.f32 %v688, %v883
        %v885 = vpop.f32.mrb[0].mxu0
        %v886 = vadd.f32 %v692, %v885
        %887 = vdwg.mxu0
        %888 = vst [vmem:[%s310] sm:$0xff] %v810
        %889 = vst [vmem:[%s310 + $0x8] sm:$0xff] %v812
        %890 = vst [vmem:[%s310 + $0x10] sm:$0xff] %v814
        %891 = vst [vmem:[%s310 + $0x18] sm:$0xff] %v816
        %892 = vst [vmem:[%s310 + $0x20] sm:$0xff] %v820
        %893 = vst [vmem:[%s310 + $0x28] sm:$0xff] %v822
        %894 = vst [vmem:[%s310 + $0x30] sm:$0xff] %v824
        %895 = vst [vmem:[%s310 + $0x38] sm:$0xff] %v826
        %896 = vst [vmem:[%s310 + $0x40] sm:$0xff] %v830
        %897 = vst [vmem:[%s310 + $0x48] sm:$0xff] %v832
        %898 = vst [vmem:[%s310 + $0x50] sm:$0xff] %v834
        %899 = vst [vmem:[%s310 + $0x58] sm:$0xff] %v836
        %900 = vst [vmem:[%s310 + $0x60] sm:$0xff] %v840
        %901 = vst [vmem:[%s310 + $0x68] sm:$0xff] %v842
        %902 = vst [vmem:[%s310 + $0x70] sm:$0xff] %v844
        %903 = vst [vmem:[%s310 + $0x78] sm:$0xff] %v846
        %904 = vst [vmem:[%s310 + $0x80] sm:$0xff] %v850
        %905 = vst [vmem:[%s310 + $0x88] sm:$0xff] %v852
        %906 = vst [vmem:[%s310 + $0x90] sm:$0xff] %v854
        %907 = vst [vmem:[%s310 + $0x98] sm:$0xff] %v856
        %908 = vst [vmem:[%s310 + $0xa0] sm:$0xff] %v860
        %909 = vst [vmem:[%s310 + $0xa8] sm:$0xff] %v862
        %910 = vst [vmem:[%s310 + $0xb0] sm:$0xff] %v864
        %911 = vst [vmem:[%s310 + $0xb8] sm:$0xff] %v866
        %912 = vst [vmem:[%s310 + $0xc0] sm:$0xff] %v870
        %913 = vst [vmem:[%s310 + $0xc8] sm:$0xff] %v872
        %914 = vst [vmem:[%s310 + $0xd0] sm:$0xff] %v874
        %915 = vst [vmem:[%s310 + $0xd8] sm:$0xff] %v876
        %916 = vst [vmem:[%s310 + $0xe0] sm:$0xff] %v880
        %917 = vst [vmem:[%s310 + $0xe8] sm:$0xff] %v882
        %918 = vst [vmem:[%s310 + $0xf0] sm:$0xff] %v884
        %919 = vst [vmem:[%s310 + $0xf8] sm:$0xff] %v886
        %s920 = sand.u32 %s146, 1
        %s921 = scalar_lea.sflag [#allocation4], %s920
        %s922 = sand.u32 %s146, 1
        %s923 = smul.addr %s922, 128
        %s924 = scalar_lea.vmem [#allocation8], %s923
        %s925 = sand.u32 %s172, 1
        %s926 = scalar_lea.sflag [#allocation10], %s925
        %s927 = sand.u32 %s172, 1
        %s928 = smul.addr %s927, 256
        %s929 = scalar_lea.vmem [#allocation9], %s928
        // Predicated region
        $region53: #{tpu_custom_call.1} parent=39 // pred_check
          %p930 = pneg %p156
        $region54: #{tpu_custom_call.1} parent=39 // pred_check_branch
          %932 = sbr.rel (%p930) target = $region56
        $region55: #{tpu_custom_call.1} parent=39 // pred_region
          %s933 = smul.u32 16, %s28
          %s935 = ssub.s32 2048, 2048
          %936 = vsyncadd %s921, %s935
          %s937 = smul.addr %s933, 128
          %s938 = scalar_lea.hbm %s5, %s937
          %s939 = sshll.u32 %s924, 4
          %s940 = int_to_ptr.vmem [resolvable:$true] %s939
          %945 = dma.vmem_to_hbm [thread:$0]  %s940, 2048, %s938, %s921, 128, 128, 8
        $region56: #{tpu_custom_call.1} parent=39 // pred_fallthru
          _
        // Predicated region
        $region57: #{tpu_custom_call.1} parent=39 // pred_check
          %p946 = pneg %p182
        $region58: #{tpu_custom_call.1} parent=39 // pred_check_branch
          %948 = sbr.rel (%p946) target = $region60
        $region59: #{tpu_custom_call.1} parent=39 // pred_region
          %s949 = smul.u32 16, %s28
          %s951 = ssub.s32 4096, 4096
          %952 = vsyncadd %s926, %s951
          %s953 = smul.addr %s949, 2
          %s954 = smul.addr %s953, 128
          %s955 = scalar_lea.hbm %s6, %s954
          %s956 = sshll.u32 %s929, 4
          %s957 = int_to_ptr.vmem [resolvable:$true] %s956
          %962 = dma.vmem_to_hbm [thread:$0]  %s957, 4096, %s955, %s926, 256, 256, 16
        $region60: #{tpu_custom_call.1} parent=39 // pred_fallthru
          _
      $region40: #{tpu_custom_call.1} parent=5 // pred_fallthru
        _
      %p963 = scmp.le.s32.totalorder 2, %s23
      // Predicated region
      $region61: #{tpu_custom_call.1} parent=5 // pred_check
        %p964 = pneg %p963
      $region62: #{tpu_custom_call.1} parent=5 // pred_check_branch
        %966 = sbr.rel (%p964) target = $region64
      $region63: #{tpu_custom_call.1} parent=5 // pred_region
        %s967 = ssub.s32 %s23, 2
        // Predicated region
        $region65: #{tpu_custom_call.1} parent=63 // pred_check
          %p968 = pneg %p162
        $region66: #{tpu_custom_call.1} parent=63 // pred_check_branch
          %970 = sbr.rel (%p968) target = $region68
        $region67: #{tpu_custom_call.1} parent=63 // pred_region
          %s971 = sand.u32 %s147, 1
          %s972 = scalar_lea.sflag [#allocation4], %s971
          %s973 = sand.u32 %s147, 1
          %s974 = smul.addr %s973, 128
          %s975 = scalar_lea.vmem [#allocation8], %s974
          %976 = dma.done %s972, 2048
        $region68: #{tpu_custom_call.1} parent=63 // pred_fallthru
          _
        // Predicated region
        $region69: #{tpu_custom_call.1} parent=63 // pred_check
          %p977 = pneg %p188
        $region70: #{tpu_custom_call.1} parent=63 // pred_check_branch
          %979 = sbr.rel (%p977) target = $region72
        $region71: #{tpu_custom_call.1} parent=63 // pred_region
          %s980 = sand.u32 %s173, 1
          %s981 = scalar_lea.sflag [#allocation10], %s980
          %s982 = sand.u32 %s173, 1
          %s983 = smul.addr %s982, 256
          %s984 = scalar_lea.vmem [#allocation9], %s983
          %985 = dma.done %s981, 4096
        $region72: #{tpu_custom_call.1} parent=63 // pred_fallthru
          _
      $region64: #{tpu_custom_call.1} parent=5 // pred_fallthru
        _
    $region6: #{tpu_custom_call.1} parent=1 // loop_footer
      %s27 = sadd.s32 1, %s23
    $region7: #{tpu_custom_call.1} parent=1 // loop_footer_branch
      %22 = sbr.rel target = $region3
    $region8: #{tpu_custom_call.1} parent=1 // loop_exit
      _
    %986 = vsyncpa [#allocation3], 1
    %s987 = scalar_lea.sflag [#allocation3], 1
    %988 = vsyncpa %s987, 1
    %989 = vsyncpa [#allocation6], 1
    %990 = vsyncpa [#allocation4], 1
    %s991 = scalar_lea.sflag [#allocation4], 1
    %992 = vsyncpa %s991, 1
    %993 = vsyncpa [#allocation10], 1
    %s994 = scalar_lea.sflag [#allocation10], 1
    %995 = vsyncpa %s994, 1

</llo_original>
